<compile_context>
chip_gen: v7x
topology: tpu7x:2x2x1
jax: 0.10.0
libtpu: 0.0.40
codegen_flags: <defaults>
</compile_context>

<pallas_src>
import math

import jax
import jax.numpy as jnp
from jax import lax
from jax.experimental import pallas as pl
from jax.experimental.pallas import tpu as pltpu


# ---------------------------------------------------------------------------
# Lane-packed kernel (feature width D is a power-of-two divisor of 128)
# ---------------------------------------------------------------------------

def _make_packed_sparsemax_kernel(D, P, rc, n_chunks):
    """Kernel over a (TR, P) tile; each kernel row packs P // D independent rows."""
    log_steps = []                       # doubling steps for segment all-reduce
    t = 1
    while t < D:
        log_steps.append(t)
        t *= 2
    multi_seg = P != D
    unroll = 2 if n_chunks >= 2 else 1   # partial unroll: LLO sees next chunk's loads

    def seg_shift(v, s, masks):
        """Circular left-shift by `s` inside each D-lane segment of the last axis.

        result[..., i] = v[..., (i // D) * D + ((i % D) + s) % D]

        Single-vrot pltpu.roll (jnp.roll semantics, non-negative shifts) plus
        one select with a precomputed wrap mask; a plain rotate when the whole
        row is one segment.
        """
        if not multi_seg:
            return pltpu.roll(v, P - s, axis=1)       # == jnp.roll(v, -s, axis=1)
        a = pltpu.roll(v, P - s, axis=1)              # v[..., i + s]
        b = pltpu.roll(v, D - s, axis=1)              # v[..., i + s - D]
        return jnp.where(masks[s], a, b)

    def kernel(x_ref, o_ref):
        # Wrap masks hoisted once per grid step (one compare per shift per
        # chunk otherwise); kept at (1, P) to avoid vreg-pressure growth.
        if multi_seg:
            seg_pos = lax.broadcasted_iota(jnp.int32, (1, P), 1) & (D - 1)
            masks = {s: seg_pos < (D - s) for s in range(1, D)}
        else:
            masks = None

        def chunk(c, carry):
            r0 = pl.multiple_of(c * rc, rc)
            x = x_ref[pl.ds(r0, rc), :].astype(jnp.float32)       # (rc, P)

            # Segment max via log2(D) doubling shifts, stabilize like the module.
            m = x
            for st in log_steps:
                m = jnp.maximum(m, seg_shift(m, st, masks))
            z = x - m

            # k_i = #{j in segment : z_j >= z_i}, S_i = sum{z_j : z_j >= z_i}
            # via D-1 segment-circular shifts (no O(rc*D*D) temporaries, bool
            # masks + where, no cast-then-multiply pass).  -inf padding lanes
            # never satisfy ge for real lanes, so they never enter k or S.
            # TODO(synk): log-depth (bitonic / tau-bisection) variant for D >= 32.
            k = jnp.ones_like(z)                                  # self-inclusive
            S = z
            for s in range(1, D):
                w = seg_shift(z, s, masks)
                ge = w >= z
                k = k + jnp.where(ge, 1.0, 0.0)
                S = S + jnp.where(ge, w, 0.0)

            # Support size k* and its prefix sum S* with ONE joint log2(D)
            # doubling reduction: argmax over k with S riding along (lanes with
            # equal k provably carry equal S, so no float-equality tie test).
            cond = (1.0 + k * z) > S
            kk = jnp.where(cond, k, 0.0)
            ss = jnp.where(cond, S, 0.0)
            for st in log_steps:
                ok = seg_shift(kk, st, masks)
                osum = seg_shift(ss, st, masks)
                take = ok > kk
                kk = jnp.where(take, ok, kk)
                ss = jnp.where(take, osum, ss)
            tau = (ss - 1.0) / kk                                 # one exact divide

            o_ref[pl.ds(r0, rc), :] = jnp.maximum(z - tau, 0.0).astype(o_ref.dtype)
            return carry

        # NOTE: a partial last grid block runs `chunk` on rows past the array
        # end (uninitialized VMEM); those rows may produce Inf/NaN but Pallas
        # masks them on writeback, so stored outputs stay correct.
        lax.fori_loop(0, n_chunks, chunk, 0, unroll=unroll)

    return kernel


# ---------------------------------------------------------------------------
# General-D kernel (D > 128): pairwise formulation, j-axis chunked
# ---------------------------------------------------------------------------

def _make_pairwise_sparsemax_kernel(D, cj):
    def kernel(x_ref, o_ref):
        x = x_ref[...].astype(jnp.float32)                        # (TR, D)
        z = x - jnp.max(x, axis=-1, keepdims=True)
        z3 = z[:, :, None]                  # hoisted: no re-broadcast per chunk
        k = jnp.zeros(z.shape, jnp.float32)
        S = jnp.zeros(z.shape, jnp.float32)
        for j0 in range(0, D, cj):                                # static chunk loop
            zj3 = z[:, j0:j0 + cj][:, None, :]                    # (TR, 1, cj')
            ge = zj3 >= z3                                        # (TR, D, cj') bool
            k = k + jnp.sum(jnp.where(ge, 1.0, 0.0), axis=-1)
            S = S + jnp.sum(jnp.where(ge, zj3, 0.0), axis=-1)
        cond = (1.0 + k * z) > S
        k_star = jnp.max(jnp.where(cond, k, 0.0), axis=-1, keepdims=True)
        # k holds small exactly-representable integers in f32, so this equality
        # tie-test is exact (do not move the accumulation to bf16).
        S_star = jnp.max(jnp.where(cond & (k == k_star), S, -jnp.inf),
                         axis=-1, keepdims=True)
        tau = (S_star - 1.0) / k_star
        o_ref[...] = jnp.maximum(z - tau, 0.0).astype(o_ref.dtype)
        # TODO(synk): tau-bisection for very large D to drop the O(D^2) work.
    return kernel


# ---------------------------------------------------------------------------
# Wrapper
# ---------------------------------------------------------------------------

def _tc_per_chip():
    """TensorCores per chip (2 on v7x and megacore v4/v5p, else 1)."""
    try:
        kind = jax.devices()[0].device_kind.lower()
    except Exception:
        return 1
    if "v7" in kind or "v4" in kind or "v5p" in kind:
        return 2
    return 1


def _pick_row_tile(n_rows, requested, n_cores):
    """Row tile: multiple of 8 (or the full tiny extent).  On dual-TC chips cap
    at half the rows so the 1-D 'parallel' grid feeds both cores; on single-TC
    chips only shrink when >= 4 grid steps still leave a >= 512-row tile
    (per-step overhead vs. pipelining trade-off)."""
    if n_rows <= 8:
        return n_rows
    tr = min(requested, n_rows)
    if n_cores >= 2:
        if n_rows >= 16:
            tr = min(tr, (n_rows + 1) // 2)
    else:
        if n_rows >= 4 * 512:
            tr = min(tr, max(512, (n_rows + 3) // 4))
    return max(8, (tr // 8) * 8)


def _vmem_limit(in_bytes, out_bytes, temp_bytes):
    """Tight-but-safe VMEM limit from the actual per-step footprint."""
    need = in_bytes + out_bytes + temp_bytes
    return int(min(max(2 * need, 8 * 1024 * 1024), 64 * 1024 * 1024))


def sparsemax(x, dim=-1, row_tile=1024):
    """Sparsemax over `dim` (default last); forward pass of TabNet's Sparsemax."""
    move = dim not in (-1, x.ndim - 1)
    if move:
        x = jnp.moveaxis(x, dim, -1)
    orig_shape = x.shape
    D = orig_shape[-1]
    x2d = x.reshape(-1, D)
    rows = x2d.shape[0]
    itemsize = jnp.dtype(x2d.dtype).itemsize
    n_cores = _tc_per_chip()

    if D <= 128:
        # Lane-packed path.  -inf-pad the feature axis to the next power-of-two
        # divisor of 128 (no-op when D already is one), then pad rows to a
        # multiple of g = 128 // Dp so lane packing never degrades.
        Dp = 1 if D <= 1 else 1 << (D - 1).bit_length()
        xw = x2d
        if Dp != D:
            xw = jnp.pad(xw, ((0, 0), (0, Dp - D)), constant_values=-jnp.inf)
        g = 128 // Dp
        pad_rows = (-rows) % g
        if pad_rows:
            xw = jnp.pad(xw, ((0, pad_rows), (0, 0)))
        rows_p = rows + pad_rows
        P = g * Dp
        Rp = rows_p // g
        xp = xw.reshape(Rp, P)                       # contiguous -> free reshape

        tr = _pick_row_tile(Rp, row_tile, n_cores)
        rc = 16 if tr % 16 == 0 else (8 if tr % 8 == 0 else tr)
        kernel = _make_packed_sparsemax_kernel(Dp, P, rc, tr // rc)

        blk = tr * P * itemsize
        vmem_limit = _vmem_limit(2 * blk, 2 * blk, 16 * rc * P * 4)
        cost = pl.CostEstimate(flops=int(7 * rows_p * Dp * Dp),
                               transcendentals=0,
                               bytes_accessed=int(2 * rows_p * Dp * itemsize))
        outp = pl.pallas_call(
            kernel,
            out_shape=jax.ShapeDtypeStruct((Rp, P), x2d.dtype),
            grid=(pl.cdiv(Rp, tr),),                 # partial last block is masked
            in_specs=[pl.BlockSpec((tr, P), lambda i: (i, 0))],
            out_specs=pl.BlockSpec((tr, P), lambda i: (i, 0)),
            compiler_params=pltpu.CompilerParams(
                dimension_semantics=("parallel",),
                vmem_limit_bytes=vmem_limit),
            cost_estimate=cost,
        )(xp)
        out2d = outp.reshape(rows_p, Dp)
        if pad_rows or Dp != D:
            out2d = out2d[:rows, :D]
    else:
        # D > 128: pairwise formulation with chunked j-axis.
        cj = 128
        # ~3 live (tr, D, cj) temporaries -> keep them to a few MiB (v7x-safe).
        budget_rows = max(8, (2 * 1024 * 1024) // (4 * D * cj))
        tr = _pick_row_tile(rows, min(row_tile, budget_rows), n_cores)
        kernel = _make_pairwise_sparsemax_kernel(D, cj)
        blk = tr * D * itemsize
        vmem_limit = _vmem_limit(2 * blk, 2 * blk, 3 * tr * D * cj * 4)
        cost = pl.CostEstimate(flops=int(3 * rows * D * D),
                               transcendentals=0,
                               bytes_accessed=int(2 * rows * D * itemsize))
        out2d = pl.pallas_call(
            kernel,
            out_shape=jax.ShapeDtypeStruct((rows, D), x2d.dtype),
            grid=(pl.cdiv(rows, tr),),
            in_specs=[pl.BlockSpec((tr, D), lambda i: (i, 0))],
            out_specs=pl.BlockSpec((tr, D), lambda i: (i, 0)),
            compiler_params=pltpu.CompilerParams(
                dimension_semantics=("parallel",),
                vmem_limit_bytes=vmem_limit),
            cost_estimate=cost,
        )(x2d)

    out = out2d.reshape(orig_shape)
    if move:
        out = jnp.moveaxis(out, -1, dim)
    return out


def _sparsemax_ref(x):
    """Pure-JAX reference mirroring the PyTorch sort-based algorithm."""
    orig = x.shape
    D = orig[-1]
    z = x.reshape(-1, D)
    z = z - jnp.max(z, axis=1, keepdims=True)
    zs = -jnp.sort(-z, axis=1)                                   # descending
    rng = jnp.arange(1, D + 1, dtype=z.dtype)[None, :]
    bound = 1 + rng * zs
    csum = jnp.cumsum(zs, axis=1)
    is_gt = (bound > csum).astype(z.dtype)
    k = jnp.max(is_gt * rng, axis=1, keepdims=True)
    taus = (jnp.sum(is_gt * zs, axis=1, keepdims=True) - 1) / k
    return jnp.maximum(jnp.zeros_like(z), z - taus).reshape(orig)


if __name__ == "__main__":
    key = jax.random.PRNGKey(0)
    # Primary spec-sized input plus shapes exercising multi-chunk tiles, a
    # partial last grid block, row padding (rows % (128//D) != 0) and feature
    # -inf padding (D = 24 -> 32).
    shapes = [(2, 4, 16, 16), (32, 64, 16), (5, 24, 16), (67, 16), (8, 5, 24)]
    for idx, shp in enumerate(shapes):
        x = jax.random.normal(jax.random.fold_in(key, idx), shp, dtype=jnp.float32)
        y = jax.block_until_ready(sparsemax(x, dim=-1))
        y_ref = _sparsemax_ref(x)
        assert y.shape == x.shape and y.dtype == x.dtype
        # Sparsemax rows sum to 1 and match the sort-based reference.
        assert jnp.allclose(jnp.sum(y, axis=-1), 1.0, atol=1e-5)
        assert jnp.allclose(y, y_ref, atol=1e-5)
    print("KERNEL_OK")
</pallas_src>

<mosaic_0001>
module attributes {stable_mosaic.version = 11 : i64} {
  func.func @kernel(%arg0: i32, %arg1: memref<16x128xf32, #tpu.memory_space<vmem>>, %arg2: memref<16x128xf32, #tpu.memory_space<vmem>>) attributes {dimension_semantics = [#tpu.dimension_semantics<parallel>], iteration_bounds = array<i64: 1>, scalar_prefetch = 0 : i64, scratch_operands = 0 : i64, tpu.core_type = #tpu.core_type<tc>, window_params = [{transform_indices = @transform_0, window_bounds = array<i64: 16, 128>}, {transform_indices = @transform_1, window_bounds = array<i64: 16, 128>}]} {
    %0 = tpu.iota {dimensions = array<i32: 1>} : vector<1x128xi32>
    %c15_i32 = arith.constant 15 : i32
    %1 = vector.broadcast %c15_i32 : i32 to vector<1x128xi32>
    %2 = arith.andi %0, %1 : vector<1x128xi32>
    %c15_i32_0 = arith.constant 15 : i32
    %3 = vector.broadcast %c15_i32_0 : i32 to vector<1x128xi32>
    %4 = arith.cmpi slt, %2, %3 : vector<1x128xi32>
    %c14_i32 = arith.constant 14 : i32
    %5 = vector.broadcast %c14_i32 : i32 to vector<1x128xi32>
    %6 = arith.cmpi slt, %2, %5 : vector<1x128xi32>
    %c13_i32 = arith.constant 13 : i32
    %7 = vector.broadcast %c13_i32 : i32 to vector<1x128xi32>
    %8 = arith.cmpi slt, %2, %7 : vector<1x128xi32>
    %c12_i32 = arith.constant 12 : i32
    %9 = vector.broadcast %c12_i32 : i32 to vector<1x128xi32>
    %10 = arith.cmpi slt, %2, %9 : vector<1x128xi32>
    %c11_i32 = arith.constant 11 : i32
    %11 = vector.broadcast %c11_i32 : i32 to vector<1x128xi32>
    %12 = arith.cmpi slt, %2, %11 : vector<1x128xi32>
    %c10_i32 = arith.constant 10 : i32
    %13 = vector.broadcast %c10_i32 : i32 to vector<1x128xi32>
    %14 = arith.cmpi slt, %2, %13 : vector<1x128xi32>
    %c9_i32 = arith.constant 9 : i32
    %15 = vector.broadcast %c9_i32 : i32 to vector<1x128xi32>
    %16 = arith.cmpi slt, %2, %15 : vector<1x128xi32>
    %c8_i32 = arith.constant 8 : i32
    %17 = vector.broadcast %c8_i32 : i32 to vector<1x128xi32>
    %18 = arith.cmpi slt, %2, %17 : vector<1x128xi32>
    %c7_i32 = arith.constant 7 : i32
    %19 = vector.broadcast %c7_i32 : i32 to vector<1x128xi32>
    %20 = arith.cmpi slt, %2, %19 : vector<1x128xi32>
    %c6_i32 = arith.constant 6 : i32
    %21 = vector.broadcast %c6_i32 : i32 to vector<1x128xi32>
    %22 = arith.cmpi slt, %2, %21 : vector<1x128xi32>
    %c5_i32 = arith.constant 5 : i32
    %23 = vector.broadcast %c5_i32 : i32 to vector<1x128xi32>
    %24 = arith.cmpi slt, %2, %23 : vector<1x128xi32>
    %c4_i32 = arith.constant 4 : i32
    %25 = vector.broadcast %c4_i32 : i32 to vector<1x128xi32>
    %26 = arith.cmpi slt, %2, %25 : vector<1x128xi32>
    %c3_i32 = arith.constant 3 : i32
    %27 = vector.broadcast %c3_i32 : i32 to vector<1x128xi32>
    %28 = arith.cmpi slt, %2, %27 : vector<1x128xi32>
    %c2_i32 = arith.constant 2 : i32
    %29 = vector.broadcast %c2_i32 : i32 to vector<1x128xi32>
    %30 = arith.cmpi slt, %2, %29 : vector<1x128xi32>
    %c1_i32 = arith.constant 1 : i32
    %31 = vector.broadcast %c1_i32 : i32 to vector<1x128xi32>
    %32 = arith.cmpi slt, %2, %31 : vector<1x128xi32>
    %c0_i32 = arith.constant 0 : i32
    %c16_i32 = arith.constant 16 : i32
    %33 = arith.muli %c0_i32, %c16_i32 : i32
    %34 = tpu.assume_multiple %33, 16 : i32
    %35 = arith.index_cast %34 : i32 to index
    %c0 = arith.constant 0 : index
    %36 = vector.load %arg1[%35, %c0] : memref<16x128xf32, #tpu.memory_space<vmem>>, vector<16x128xf32>
    %c127_i32 = arith.constant 127 : i32
    %37 = tpu.dynamic_rotate %36 by %c127_i32 dim 1 : vector<16x128xf32>, i32 -> vector<16x128xf32>
    %c15_i32_1 = arith.constant 15 : i32
    %38 = tpu.dynamic_rotate %36 by %c15_i32_1 dim 1 : vector<16x128xf32>, i32 -> vector<16x128xf32>
    %39 = vector.shape_cast %4 : vector<1x128xi1> to vector<1x128xi1>
    %40 = vector.broadcast %39 : vector<1x128xi1> to vector<16x128xi1>
    %41 = arith.select %40, %37, %38 : vector<16x128xi1>, vector<16x128xf32>
    %42 = arith.maximumf %36, %41 : vector<16x128xf32>
    %c126_i32 = arith.constant 126 : i32
    %43 = tpu.dynamic_rotate %42 by %c126_i32 dim 1 : vector<16x128xf32>, i32 -> vector<16x128xf32>
    %c14_i32_2 = arith.constant 14 : i32
    %44 = tpu.dynamic_rotate %42 by %c14_i32_2 dim 1 : vector<16x128xf32>, i32 -> vector<16x128xf32>
    %45 = vector.shape_cast %6 : vector<1x128xi1> to vector<1x128xi1>
    %46 = vector.broadcast %45 : vector<1x128xi1> to vector<16x128xi1>
    %47 = arith.select %46, %43, %44 : vector<16x128xi1>, vector<16x128xf32>
    %48 = arith.maximumf %42, %47 : vector<16x128xf32>
    %c124_i32 = arith.constant 124 : i32
    %49 = tpu.dynamic_rotate %48 by %c124_i32 dim 1 : vector<16x128xf32>, i32 -> vector<16x128xf32>
    %c12_i32_3 = arith.constant 12 : i32
    %50 = tpu.dynamic_rotate %48 by %c12_i32_3 dim 1 : vector<16x128xf32>, i32 -> vector<16x128xf32>
    %51 = vector.shape_cast %10 : vector<1x128xi1> to vector<1x128xi1>
    %52 = vector.broadcast %51 : vector<1x128xi1> to vector<16x128xi1>
    %53 = arith.select %52, %49, %50 : vector<16x128xi1>, vector<16x128xf32>
    %54 = arith.maximumf %48, %53 : vector<16x128xf32>
    %c120_i32 = arith.constant 120 : i32
    %55 = tpu.dynamic_rotate %54 by %c120_i32 dim 1 : vector<16x128xf32>, i32 -> vector<16x128xf32>
    %c8_i32_4 = arith.constant 8 : i32
    %56 = tpu.dynamic_rotate %54 by %c8_i32_4 dim 1 : vector<16x128xf32>, i32 -> vector<16x128xf32>
    %57 = vector.shape_cast %18 : vector<1x128xi1> to vector<1x128xi1>
    %58 = vector.broadcast %57 : vector<1x128xi1> to vector<16x128xi1>
    %59 = arith.select %58, %55, %56 : vector<16x128xi1>, vector<16x128xf32>
    %60 = arith.maximumf %54, %59 : vector<16x128xf32>
    %61 = arith.subf %36, %60 : vector<16x128xf32>
    %cst = arith.constant 1.000000e+00 : f32
    %62 = vector.broadcast %cst : f32 to vector<16x128xf32>
    %c127_i32_5 = arith.constant 127 : i32
    %63 = tpu.dynamic_rotate %61 by %c127_i32_5 dim 1 : vector<16x128xf32>, i32 -> vector<16x128xf32>
    %c15_i32_6 = arith.constant 15 : i32
    %64 = tpu.dynamic_rotate %61 by %c15_i32_6 dim 1 : vector<16x128xf32>, i32 -> vector<16x128xf32>
    %65 = vector.shape_cast %4 : vector<1x128xi1> to vector<1x128xi1>
    %66 = vector.broadcast %65 : vector<1x128xi1> to vector<16x128xi1>
    %67 = arith.select %66, %63, %64 : vector<16x128xi1>, vector<16x128xf32>
    %68 = arith.cmpf oge, %67, %61 : vector<16x128xf32>
    %cst_7 = arith.constant 1.000000e+00 : f32
    %cst_8 = arith.constant 0.000000e+00 : f32
    %69 = vector.broadcast %cst_7 : f32 to vector<16x128xf32>
    %70 = vector.broadcast %cst_8 : f32 to vector<16x128xf32>
    %71 = arith.select %68, %69, %70 : vector<16x128xi1>, vector<16x128xf32>
    %72 = arith.addf %62, %71 : vector<16x128xf32>
    %cst_9 = arith.constant 0.000000e+00 : f32
    %73 = vector.broadcast %cst_9 : f32 to vector<16x128xf32>
    %74 = arith.select %68, %67, %73 : vector<16x128xi1>, vector<16x128xf32>
    %75 = arith.addf %61, %74 : vector<16x128xf32>
    %c126_i32_10 = arith.constant 126 : i32
    %76 = tpu.dynamic_rotate %61 by %c126_i32_10 dim 1 : vector<16x128xf32>, i32 -> vector<16x128xf32>
    %c14_i32_11 = arith.constant 14 : i32
    %77 = tpu.dynamic_rotate %61 by %c14_i32_11 dim 1 : vector<16x128xf32>, i32 -> vector<16x128xf32>
    %78 = vector.shape_cast %6 : vector<1x128xi1> to vector<1x128xi1>
    %79 = vector.broadcast %78 : vector<1x128xi1> to vector<16x128xi1>
    %80 = arith.select %79, %76, %77 : vector<16x128xi1>, vector<16x128xf32>
    %81 = arith.cmpf oge, %80, %61 : vector<16x128xf32>
    %cst_12 = arith.constant 1.000000e+00 : f32
    %cst_13 = arith.constant 0.000000e+00 : f32
    %82 = vector.broadcast %cst_12 : f32 to vector<16x128xf32>
    %83 = vector.broadcast %cst_13 : f32 to vector<16x128xf32>
    %84 = arith.select %81, %82, %83 : vector<16x128xi1>, vector<16x128xf32>
    %85 = arith.addf %72, %84 : vector<16x128xf32>
    %cst_14 = arith.constant 0.000000e+00 : f32
    %86 = vector.broadcast %cst_14 : f32 to vector<16x128xf32>
    %87 = arith.select %81, %80, %86 : vector<16x128xi1>, vector<16x128xf32>
    %88 = arith.addf %75, %87 : vector<16x128xf32>
    %c125_i32 = arith.constant 125 : i32
    %89 = tpu.dynamic_rotate %61 by %c125_i32 dim 1 : vector<16x128xf32>, i32 -> vector<16x128xf32>
    %c13_i32_15 = arith.constant 13 : i32
    %90 = tpu.dynamic_rotate %61 by %c13_i32_15 dim 1 : vector<16x128xf32>, i32 -> vector<16x128xf32>
    %91 = vector.shape_cast %8 : vector<1x128xi1> to vector<1x128xi1>
    %92 = vector.broadcast %91 : vector<1x128xi1> to vector<16x128xi1>
    %93 = arith.select %92, %89, %90 : vector<16x128xi1>, vector<16x128xf32>
    %94 = arith.cmpf oge, %93, %61 : vector<16x128xf32>
    %cst_16 = arith.constant 1.000000e+00 : f32
    %cst_17 = arith.constant 0.000000e+00 : f32
    %95 = vector.broadcast %cst_16 : f32 to vector<16x128xf32>
    %96 = vector.broadcast %cst_17 : f32 to vector<16x128xf32>
    %97 = arith.select %94, %95, %96 : vector<16x128xi1>, vector<16x128xf32>
    %98 = arith.addf %85, %97 : vector<16x128xf32>
    %cst_18 = arith.constant 0.000000e+00 : f32
    %99 = vector.broadcast %cst_18 : f32 to vector<16x128xf32>
    %100 = arith.select %94, %93, %99 : vector<16x128xi1>, vector<16x128xf32>
    %101 = arith.addf %88, %100 : vector<16x128xf32>
    %c124_i32_19 = arith.constant 124 : i32
    %102 = tpu.dynamic_rotate %61 by %c124_i32_19 dim 1 : vector<16x128xf32>, i32 -> vector<16x128xf32>
    %c12_i32_20 = arith.constant 12 : i32
    %103 = tpu.dynamic_rotate %61 by %c12_i32_20 dim 1 : vector<16x128xf32>, i32 -> vector<16x128xf32>
    %104 = vector.shape_cast %10 : vector<1x128xi1> to vector<1x128xi1>
    %105 = vector.broadcast %104 : vector<1x128xi1> to vector<16x128xi1>
    %106 = arith.select %105, %102, %103 : vector<16x128xi1>, vector<16x128xf32>
    %107 = arith.cmpf oge, %106, %61 : vector<16x128xf32>
    %cst_21 = arith.constant 1.000000e+00 : f32
    %cst_22 = arith.constant 0.000000e+00 : f32
    %108 = vector.broadcast %cst_21 : f32 to vector<16x128xf32>
    %109 = vector.broadcast %cst_22 : f32 to vector<16x128xf32>
    %110 = arith.select %107, %108, %109 : vector<16x128xi1>, vector<16x128xf32>
    %111 = arith.addf %98, %110 : vector<16x128xf32>
    %cst_23 = arith.constant 0.000000e+00 : f32
    %112 = vector.broadcast %cst_23 : f32 to vector<16x128xf32>
    %113 = arith.select %107, %106, %112 : vector<16x128xi1>, vector<16x128xf32>
    %114 = arith.addf %101, %113 : vector<16x128xf32>
    %c123_i32 = arith.constant 123 : i32
    %115 = tpu.dynamic_rotate %61 by %c123_i32 dim 1 : vector<16x128xf32>, i32 -> vector<16x128xf32>
    %c11_i32_24 = arith.constant 11 : i32
    %116 = tpu.dynamic_rotate %61 by %c11_i32_24 dim 1 : vector<16x128xf32>, i32 -> vector<16x128xf32>
    %117 = vector.shape_cast %12 : vector<1x128xi1> to vector<1x128xi1>
    %118 = vector.broadcast %117 : vector<1x128xi1> to vector<16x128xi1>
    %119 = arith.select %118, %115, %116 : vector<16x128xi1>, vector<16x128xf32>
    %120 = arith.cmpf oge, %119, %61 : vector<16x128xf32>
    %cst_25 = arith.constant 1.000000e+00 : f32
    %cst_26 = arith.constant 0.000000e+00 : f32
    %121 = vector.broadcast %cst_25 : f32 to vector<16x128xf32>
    %122 = vector.broadcast %cst_26 : f32 to vector<16x128xf32>
    %123 = arith.select %120, %121, %122 : vector<16x128xi1>, vector<16x128xf32>
    %124 = arith.addf %111, %123 : vector<16x128xf32>
    %cst_27 = arith.constant 0.000000e+00 : f32
    %125 = vector.broadcast %cst_27 : f32 to vector<16x128xf32>
    %126 = arith.select %120, %119, %125 : vector<16x128xi1>, vector<16x128xf32>
    %127 = arith.addf %114, %126 : vector<16x128xf32>
    %c122_i32 = arith.constant 122 : i32
    %128 = tpu.dynamic_rotate %61 by %c122_i32 dim 1 : vector<16x128xf32>, i32 -> vector<16x128xf32>
    %c10_i32_28 = arith.constant 10 : i32
    %129 = tpu.dynamic_rotate %61 by %c10_i32_28 dim 1 : vector<16x128xf32>, i32 -> vector<16x128xf32>
    %130 = vector.shape_cast %14 : vector<1x128xi1> to vector<1x128xi1>
    %131 = vector.broadcast %130 : vector<1x128xi1> to vector<16x128xi1>
    %132 = arith.select %131, %128, %129 : vector<16x128xi1>, vector<16x128xf32>
    %133 = arith.cmpf oge, %132, %61 : vector<16x128xf32>
    %cst_29 = arith.constant 1.000000e+00 : f32
    %cst_30 = arith.constant 0.000000e+00 : f32
    %134 = vector.broadcast %cst_29 : f32 to vector<16x128xf32>
    %135 = vector.broadcast %cst_30 : f32 to vector<16x128xf32>
    %136 = arith.select %133, %134, %135 : vector<16x128xi1>, vector<16x128xf32>
    %137 = arith.addf %124, %136 : vector<16x128xf32>
    %cst_31 = arith.constant 0.000000e+00 : f32
    %138 = vector.broadcast %cst_31 : f32 to vector<16x128xf32>
    %139 = arith.select %133, %132, %138 : vector<16x128xi1>, vector<16x128xf32>
    %140 = arith.addf %127, %139 : vector<16x128xf32>
    %c121_i32 = arith.constant 121 : i32
    %141 = tpu.dynamic_rotate %61 by %c121_i32 dim 1 : vector<16x128xf32>, i32 -> vector<16x128xf32>
    %c9_i32_32 = arith.constant 9 : i32
    %142 = tpu.dynamic_rotate %61 by %c9_i32_32 dim 1 : vector<16x128xf32>, i32 -> vector<16x128xf32>
    %143 = vector.shape_cast %16 : vector<1x128xi1> to vector<1x128xi1>
    %144 = vector.broadcast %143 : vector<1x128xi1> to vector<16x128xi1>
    %145 = arith.select %144, %141, %142 : vector<16x128xi1>, vector<16x128xf32>
    %146 = arith.cmpf oge, %145, %61 : vector<16x128xf32>
    %cst_33 = arith.constant 1.000000e+00 : f32
    %cst_34 = arith.constant 0.000000e+00 : f32
    %147 = vector.broadcast %cst_33 : f32 to vector<16x128xf32>
    %148 = vector.broadcast %cst_34 : f32 to vector<16x128xf32>
    %149 = arith.select %146, %147, %148 : vector<16x128xi1>, vector<16x128xf32>
    %150 = arith.addf %137, %149 : vector<16x128xf32>
    %cst_35 = arith.constant 0.000000e+00 : f32
    %151 = vector.broadcast %cst_35 : f32 to vector<16x128xf32>
    %152 = arith.select %146, %145, %151 : vector<16x128xi1>, vector<16x128xf32>
    %153 = arith.addf %140, %152 : vector<16x128xf32>
    %c120_i32_36 = arith.constant 120 : i32
    %154 = tpu.dynamic_rotate %61 by %c120_i32_36 dim 1 : vector<16x128xf32>, i32 -> vector<16x128xf32>
    %c8_i32_37 = arith.constant 8 : i32
    %155 = tpu.dynamic_rotate %61 by %c8_i32_37 dim 1 : vector<16x128xf32>, i32 -> vector<16x128xf32>
    %156 = vector.shape_cast %18 : vector<1x128xi1> to vector<1x128xi1>
    %157 = vector.broadcast %156 : vector<1x128xi1> to vector<16x128xi1>
    %158 = arith.select %157, %154, %155 : vector<16x128xi1>, vector<16x128xf32>
    %159 = arith.cmpf oge, %158, %61 : vector<16x128xf32>
    %cst_38 = arith.constant 1.000000e+00 : f32
    %cst_39 = arith.constant 0.000000e+00 : f32
    %160 = vector.broadcast %cst_38 : f32 to vector<16x128xf32>
    %161 = vector.broadcast %cst_39 : f32 to vector<16x128xf32>
    %162 = arith.select %159, %160, %161 : vector<16x128xi1>, vector<16x128xf32>
    %163 = arith.addf %150, %162 : vector<16x128xf32>
    %cst_40 = arith.constant 0.000000e+00 : f32
    %164 = vector.broadcast %cst_40 : f32 to vector<16x128xf32>
    %165 = arith.select %159, %158, %164 : vector<16x128xi1>, vector<16x128xf32>
    %166 = arith.addf %153, %165 : vector<16x128xf32>
    %c119_i32 = arith.constant 119 : i32
    %167 = tpu.dynamic_rotate %61 by %c119_i32 dim 1 : vector<16x128xf32>, i32 -> vector<16x128xf32>
    %c7_i32_41 = arith.constant 7 : i32
    %168 = tpu.dynamic_rotate %61 by %c7_i32_41 dim 1 : vector<16x128xf32>, i32 -> vector<16x128xf32>
    %169 = vector.shape_cast %20 : vector<1x128xi1> to vector<1x128xi1>
    %170 = vector.broadcast %169 : vector<1x128xi1> to vector<16x128xi1>
    %171 = arith.select %170, %167, %168 : vector<16x128xi1>, vector<16x128xf32>
    %172 = arith.cmpf oge, %171, %61 : vector<16x128xf32>
    %cst_42 = arith.constant 1.000000e+00 : f32
    %cst_43 = arith.constant 0.000000e+00 : f32
    %173 = vector.broadcast %cst_42 : f32 to vector<16x128xf32>
    %174 = vector.broadcast %cst_43 : f32 to vector<16x128xf32>
    %175 = arith.select %172, %173, %174 : vector<16x128xi1>, vector<16x128xf32>
    %176 = arith.addf %163, %175 : vector<16x128xf32>
    %cst_44 = arith.constant 0.000000e+00 : f32
    %177 = vector.broadcast %cst_44 : f32 to vector<16x128xf32>
    %178 = arith.select %172, %171, %177 : vector<16x128xi1>, vector<16x128xf32>
    %179 = arith.addf %166, %178 : vector<16x128xf32>
    %c118_i32 = arith.constant 118 : i32
    %180 = tpu.dynamic_rotate %61 by %c118_i32 dim 1 : vector<16x128xf32>, i32 -> vector<16x128xf32>
    %c6_i32_45 = arith.constant 6 : i32
    %181 = tpu.dynamic_rotate %61 by %c6_i32_45 dim 1 : vector<16x128xf32>, i32 -> vector<16x128xf32>
    %182 = vector.shape_cast %22 : vector<1x128xi1> to vector<1x128xi1>
    %183 = vector.broadcast %182 : vector<1x128xi1> to vector<16x128xi1>
    %184 = arith.select %183, %180, %181 : vector<16x128xi1>, vector<16x128xf32>
    %185 = arith.cmpf oge, %184, %61 : vector<16x128xf32>
    %cst_46 = arith.constant 1.000000e+00 : f32
    %cst_47 = arith.constant 0.000000e+00 : f32
    %186 = vector.broadcast %cst_46 : f32 to vector<16x128xf32>
    %187 = vector.broadcast %cst_47 : f32 to vector<16x128xf32>
    %188 = arith.select %185, %186, %187 : vector<16x128xi1>, vector<16x128xf32>
    %189 = arith.addf %176, %188 : vector<16x128xf32>
    %cst_48 = arith.constant 0.000000e+00 : f32
    %190 = vector.broadcast %cst_48 : f32 to vector<16x128xf32>
    %191 = arith.select %185, %184, %190 : vector<16x128xi1>, vector<16x128xf32>
    %192 = arith.addf %179, %191 : vector<16x128xf32>
    %c117_i32 = arith.constant 117 : i32
    %193 = tpu.dynamic_rotate %61 by %c117_i32 dim 1 : vector<16x128xf32>, i32 -> vector<16x128xf32>
    %c5_i32_49 = arith.constant 5 : i32
    %194 = tpu.dynamic_rotate %61 by %c5_i32_49 dim 1 : vector<16x128xf32>, i32 -> vector<16x128xf32>
    %195 = vector.shape_cast %24 : vector<1x128xi1> to vector<1x128xi1>
    %196 = vector.broadcast %195 : vector<1x128xi1> to vector<16x128xi1>
    %197 = arith.select %196, %193, %194 : vector<16x128xi1>, vector<16x128xf32>
    %198 = arith.cmpf oge, %197, %61 : vector<16x128xf32>
    %cst_50 = arith.constant 1.000000e+00 : f32
    %cst_51 = arith.constant 0.000000e+00 : f32
    %199 = vector.broadcast %cst_50 : f32 to vector<16x128xf32>
    %200 = vector.broadcast %cst_51 : f32 to vector<16x128xf32>
    %201 = arith.select %198, %199, %200 : vector<16x128xi1>, vector<16x128xf32>
    %202 = arith.addf %189, %201 : vector<16x128xf32>
    %cst_52 = arith.constant 0.000000e+00 : f32
    %203 = vector.broadcast %cst_52 : f32 to vector<16x128xf32>
    %204 = arith.select %198, %197, %203 : vector<16x128xi1>, vector<16x128xf32>
    %205 = arith.addf %192, %204 : vector<16x128xf32>
    %c116_i32 = arith.constant 116 : i32
    %206 = tpu.dynamic_rotate %61 by %c116_i32 dim 1 : vector<16x128xf32>, i32 -> vector<16x128xf32>
    %c4_i32_53 = arith.constant 4 : i32
    %207 = tpu.dynamic_rotate %61 by %c4_i32_53 dim 1 : vector<16x128xf32>, i32 -> vector<16x128xf32>
    %208 = vector.shape_cast %26 : vector<1x128xi1> to vector<1x128xi1>
    %209 = vector.broadcast %208 : vector<1x128xi1> to vector<16x128xi1>
    %210 = arith.select %209, %206, %207 : vector<16x128xi1>, vector<16x128xf32>
    %211 = arith.cmpf oge, %210, %61 : vector<16x128xf32>
    %cst_54 = arith.constant 1.000000e+00 : f32
    %cst_55 = arith.constant 0.000000e+00 : f32
    %212 = vector.broadcast %cst_54 : f32 to vector<16x128xf32>
    %213 = vector.broadcast %cst_55 : f32 to vector<16x128xf32>
    %214 = arith.select %211, %212, %213 : vector<16x128xi1>, vector<16x128xf32>
    %215 = arith.addf %202, %214 : vector<16x128xf32>
    %cst_56 = arith.constant 0.000000e+00 : f32
    %216 = vector.broadcast %cst_56 : f32 to vector<16x128xf32>
    %217 = arith.select %211, %210, %216 : vector<16x128xi1>, vector<16x128xf32>
    %218 = arith.addf %205, %217 : vector<16x128xf32>
    %c115_i32 = arith.constant 115 : i32
    %219 = tpu.dynamic_rotate %61 by %c115_i32 dim 1 : vector<16x128xf32>, i32 -> vector<16x128xf32>
    %c3_i32_57 = arith.constant 3 : i32
    %220 = tpu.dynamic_rotate %61 by %c3_i32_57 dim 1 : vector<16x128xf32>, i32 -> vector<16x128xf32>
    %221 = vector.shape_cast %28 : vector<1x128xi1> to vector<1x128xi1>
    %222 = vector.broadcast %221 : vector<1x128xi1> to vector<16x128xi1>
    %223 = arith.select %222, %219, %220 : vector<16x128xi1>, vector<16x128xf32>
    %224 = arith.cmpf oge, %223, %61 : vector<16x128xf32>
    %cst_58 = arith.constant 1.000000e+00 : f32
    %cst_59 = arith.constant 0.000000e+00 : f32
    %225 = vector.broadcast %cst_58 : f32 to vector<16x128xf32>
    %226 = vector.broadcast %cst_59 : f32 to vector<16x128xf32>
    %227 = arith.select %224, %225, %226 : vector<16x128xi1>, vector<16x128xf32>
    %228 = arith.addf %215, %227 : vector<16x128xf32>
    %cst_60 = arith.constant 0.000000e+00 : f32
    %229 = vector.broadcast %cst_60 : f32 to vector<16x128xf32>
    %230 = arith.select %224, %223, %229 : vector<16x128xi1>, vector<16x128xf32>
    %231 = arith.addf %218, %230 : vector<16x128xf32>
    %c114_i32 = arith.constant 114 : i32
    %232 = tpu.dynamic_rotate %61 by %c114_i32 dim 1 : vector<16x128xf32>, i32 -> vector<16x128xf32>
    %c2_i32_61 = arith.constant 2 : i32
    %233 = tpu.dynamic_rotate %61 by %c2_i32_61 dim 1 : vector<16x128xf32>, i32 -> vector<16x128xf32>
    %234 = vector.shape_cast %30 : vector<1x128xi1> to vector<1x128xi1>
    %235 = vector.broadcast %234 : vector<1x128xi1> to vector<16x128xi1>
    %236 = arith.select %235, %232, %233 : vector<16x128xi1>, vector<16x128xf32>
    %237 = arith.cmpf oge, %236, %61 : vector<16x128xf32>
    %cst_62 = arith.constant 1.000000e+00 : f32
    %cst_63 = arith.constant 0.000000e+00 : f32
    %238 = vector.broadcast %cst_62 : f32 to vector<16x128xf32>
    %239 = vector.broadcast %cst_63 : f32 to vector<16x128xf32>
    %240 = arith.select %237, %238, %239 : vector<16x128xi1>, vector<16x128xf32>
    %241 = arith.addf %228, %240 : vector<16x128xf32>
    %cst_64 = arith.constant 0.000000e+00 : f32
    %242 = vector.broadcast %cst_64 : f32 to vector<16x128xf32>
    %243 = arith.select %237, %236, %242 : vector<16x128xi1>, vector<16x128xf32>
    %244 = arith.addf %231, %243 : vector<16x128xf32>
    %c113_i32 = arith.constant 113 : i32
    %245 = tpu.dynamic_rotate %61 by %c113_i32 dim 1 : vector<16x128xf32>, i32 -> vector<16x128xf32>
    %c1_i32_65 = arith.constant 1 : i32
    %246 = tpu.dynamic_rotate %61 by %c1_i32_65 dim 1 : vector<16x128xf32>, i32 -> vector<16x128xf32>
    %247 = vector.shape_cast %32 : vector<1x128xi1> to vector<1x128xi1>
    %248 = vector.broadcast %247 : vector<1x128xi1> to vector<16x128xi1>
    %249 = arith.select %248, %245, %246 : vector<16x128xi1>, vector<16x128xf32>
    %250 = arith.cmpf oge, %249, %61 : vector<16x128xf32>
    %cst_66 = arith.constant 1.000000e+00 : f32
    %cst_67 = arith.constant 0.000000e+00 : f32
    %251 = vector.broadcast %cst_66 : f32 to vector<16x128xf32>
    %252 = vector.broadcast %cst_67 : f32 to vector<16x128xf32>
    %253 = arith.select %250, %251, %252 : vector<16x128xi1>, vector<16x128xf32>
    %254 = arith.addf %241, %253 : vector<16x128xf32>
    %cst_68 = arith.constant 0.000000e+00 : f32
    %255 = vector.broadcast %cst_68 : f32 to vector<16x128xf32>
    %256 = arith.select %250, %249, %255 : vector<16x128xi1>, vector<16x128xf32>
    %257 = arith.addf %244, %256 : vector<16x128xf32>
    %258 = arith.mulf %254, %61 : vector<16x128xf32>
    %cst_69 = arith.constant 1.000000e+00 : f32
    %259 = vector.broadcast %cst_69 : f32 to vector<16x128xf32>
    %260 = arith.addf %259, %258 : vector<16x128xf32>
    %261 = arith.cmpf ogt, %260, %257 : vector<16x128xf32>
    %cst_70 = arith.constant 0.000000e+00 : f32
    %262 = vector.broadcast %cst_70 : f32 to vector<16x128xf32>
    %263 = arith.select %261, %254, %262 : vector<16x128xi1>, vector<16x128xf32>
    %cst_71 = arith.constant 0.000000e+00 : f32
    %264 = vector.broadcast %cst_71 : f32 to vector<16x128xf32>
    %265 = arith.select %261, %257, %264 : vector<16x128xi1>, vector<16x128xf32>
    %c127_i32_72 = arith.constant 127 : i32
    %266 = tpu.dynamic_rotate %263 by %c127_i32_72 dim 1 : vector<16x128xf32>, i32 -> vector<16x128xf32>
    %c15_i32_73 = arith.constant 15 : i32
    %267 = tpu.dynamic_rotate %263 by %c15_i32_73 dim 1 : vector<16x128xf32>, i32 -> vector<16x128xf32>
    %268 = vector.shape_cast %4 : vector<1x128xi1> to vector<1x128xi1>
    %269 = vector.broadcast %268 : vector<1x128xi1> to vector<16x128xi1>
    %270 = arith.select %269, %266, %267 : vector<16x128xi1>, vector<16x128xf32>
    %c127_i32_74 = arith.constant 127 : i32
    %271 = tpu.dynamic_rotate %265 by %c127_i32_74 dim 1 : vector<16x128xf32>, i32 -> vector<16x128xf32>
    %c15_i32_75 = arith.constant 15 : i32
    %272 = tpu.dynamic_rotate %265 by %c15_i32_75 dim 1 : vector<16x128xf32>, i32 -> vector<16x128xf32>
    %273 = vector.shape_cast %4 : vector<1x128xi1> to vector<1x128xi1>
    %274 = vector.broadcast %273 : vector<1x128xi1> to vector<16x128xi1>
    %275 = arith.select %274, %271, %272 : vector<16x128xi1>, vector<16x128xf32>
    %276 = arith.cmpf ogt, %270, %263 : vector<16x128xf32>
    %277 = arith.select %276, %270, %263 : vector<16x128xi1>, vector<16x128xf32>
    %278 = arith.select %276, %275, %265 : vector<16x128xi1>, vector<16x128xf32>
    %c126_i32_76 = arith.constant 126 : i32
    %279 = tpu.dynamic_rotate %277 by %c126_i32_76 dim 1 : vector<16x128xf32>, i32 -> vector<16x128xf32>
    %c14_i32_77 = arith.constant 14 : i32
    %280 = tpu.dynamic_rotate %277 by %c14_i32_77 dim 1 : vector<16x128xf32>, i32 -> vector<16x128xf32>
    %281 = vector.shape_cast %6 : vector<1x128xi1> to vector<1x128xi1>
    %282 = vector.broadcast %281 : vector<1x128xi1> to vector<16x128xi1>
    %283 = arith.select %282, %279, %280 : vector<16x128xi1>, vector<16x128xf32>
    %c126_i32_78 = arith.constant 126 : i32
    %284 = tpu.dynamic_rotate %278 by %c126_i32_78 dim 1 : vector<16x128xf32>, i32 -> vector<16x128xf32>
    %c14_i32_79 = arith.constant 14 : i32
    %285 = tpu.dynamic_rotate %278 by %c14_i32_79 dim 1 : vector<16x128xf32>, i32 -> vector<16x128xf32>
    %286 = vector.shape_cast %6 : vector<1x128xi1> to vector<1x128xi1>
    %287 = vector.broadcast %286 : vector<1x128xi1> to vector<16x128xi1>
    %288 = arith.select %287, %284, %285 : vector<16x128xi1>, vector<16x128xf32>
    %289 = arith.cmpf ogt, %283, %277 : vector<16x128xf32>
    %290 = arith.select %289, %283, %277 : vector<16x128xi1>, vector<16x128xf32>
    %291 = arith.select %289, %288, %278 : vector<16x128xi1>, vector<16x128xf32>
    %c124_i32_80 = arith.constant 124 : i32
    %292 = tpu.dynamic_rotate %290 by %c124_i32_80 dim 1 : vector<16x128xf32>, i32 -> vector<16x128xf32>
    %c12_i32_81 = arith.constant 12 : i32
    %293 = tpu.dynamic_rotate %290 by %c12_i32_81 dim 1 : vector<16x128xf32>, i32 -> vector<16x128xf32>
    %294 = vector.shape_cast %10 : vector<1x128xi1> to vector<1x128xi1>
    %295 = vector.broadcast %294 : vector<1x128xi1> to vector<16x128xi1>
    %296 = arith.select %295, %292, %293 : vector<16x128xi1>, vector<16x128xf32>
    %c124_i32_82 = arith.constant 124 : i32
    %297 = tpu.dynamic_rotate %291 by %c124_i32_82 dim 1 : vector<16x128xf32>, i32 -> vector<16x128xf32>
    %c12_i32_83 = arith.constant 12 : i32
    %298 = tpu.dynamic_rotate %291 by %c12_i32_83 dim 1 : vector<16x128xf32>, i32 -> vector<16x128xf32>
    %299 = vector.shape_cast %10 : vector<1x128xi1> to vector<1x128xi1>
    %300 = vector.broadcast %299 : vector<1x128xi1> to vector<16x128xi1>
    %301 = arith.select %300, %297, %298 : vector<16x128xi1>, vector<16x128xf32>
    %302 = arith.cmpf ogt, %296, %290 : vector<16x128xf32>
    %303 = arith.select %302, %296, %290 : vector<16x128xi1>, vector<16x128xf32>
    %304 = arith.select %302, %301, %291 : vector<16x128xi1>, vector<16x128xf32>
    %c120_i32_84 = arith.constant 120 : i32
    %305 = tpu.dynamic_rotate %303 by %c120_i32_84 dim 1 : vector<16x128xf32>, i32 -> vector<16x128xf32>
    %c8_i32_85 = arith.constant 8 : i32
    %306 = tpu.dynamic_rotate %303 by %c8_i32_85 dim 1 : vector<16x128xf32>, i32 -> vector<16x128xf32>
    %307 = vector.shape_cast %18 : vector<1x128xi1> to vector<1x128xi1>
    %308 = vector.broadcast %307 : vector<1x128xi1> to vector<16x128xi1>
    %309 = arith.select %308, %305, %306 : vector<16x128xi1>, vector<16x128xf32>
    %c120_i32_86 = arith.constant 120 : i32
    %310 = tpu.dynamic_rotate %304 by %c120_i32_86 dim 1 : vector<16x128xf32>, i32 -> vector<16x128xf32>
    %c8_i32_87 = arith.constant 8 : i32
    %311 = tpu.dynamic_rotate %304 by %c8_i32_87 dim 1 : vector<16x128xf32>, i32 -> vector<16x128xf32>
    %312 = vector.shape_cast %18 : vector<1x128xi1> to vector<1x128xi1>
    %313 = vector.broadcast %312 : vector<1x128xi1> to vector<16x128xi1>
    %314 = arith.select %313, %310, %311 : vector<16x128xi1>, vector<16x128xf32>
    %315 = arith.cmpf ogt, %309, %303 : vector<16x128xf32>
    %316 = arith.select %315, %309, %303 : vector<16x128xi1>, vector<16x128xf32>
    %317 = arith.select %315, %314, %304 : vector<16x128xi1>, vector<16x128xf32>
    %cst_88 = arith.constant 1.000000e+00 : f32
    %318 = vector.broadcast %cst_88 : f32 to vector<16x128xf32>
    %319 = arith.subf %317, %318 : vector<16x128xf32>
    %320 = arith.divf %319, %316 : vector<16x128xf32>
    %321 = arith.subf %61, %320 : vector<16x128xf32>
    %cst_89 = arith.constant 0.000000e+00 : f32
    %322 = vector.broadcast %cst_89 : f32 to vector<16x128xf32>
    %323 = arith.maximumf %321, %322 : vector<16x128xf32>
    %324 = arith.index_cast %34 : i32 to index
    %c0_90 = arith.constant 0 : index
    %325 = vector.load %arg2[%324, %c0_90] : memref<16x128xf32, #tpu.memory_space<vmem>>, vector<16x128xf32>
    tpu.vector_store %arg2[%324, %c0_90], %323 {strides = array<i32>} : memref<16x128xf32, #tpu.memory_space<vmem>>, vector<16x128xf32>,
    %c1_i32_91 = arith.constant 1 : i32
    return
  }
  func.func @transform_0(%arg0: i32) -> (i32, i32) {
    %c0_i32 = arith.constant 0 : i32
    %c0_i32_0 = arith.constant 0 : i32
    return %arg0, %c0_i32 : i32, i32
  }
  func.func @transform_1(%arg0: i32) -> (i32, i32) {
    %c0_i32 = arith.constant 0 : i32
    %c0_i32_0 = arith.constant 0 : i32
    return %arg0, %c0_i32 : i32, i32
  }
}

</mosaic_0001>

<llo_original>
// kernel: tpu_custom_call.1
$region0: #{tpu_custom_call.1}
  #allocation0 [shape = 'u32[]', space=smem, size = 0x4, offset = 0x4, fixed_abs, tag = 'smem constant byte address 0x4 - core index']
  #allocation1 [shape = 'u32[144,128]{1,0:T(1,128)}', space=vmem, size = 0x12000, scoped, tag = 'internal scratch']
  %s0 = inlined_call_operand.hbm [shape: f32[16,128], index: 0, kind: input, shape index: {}]
  %s1 = inlined_call_operand.hbm [shape: f32[16,128], index: 1, kind: output, shape index: {}]
  %s2 = sld [smem:[#allocation0]]
  $region18: #{tpu_custom_call.1} parent=0
    _
  %s4 = ssub.s32 1, %s2
  %s5 = scalar_select 0, %s4, %s2
  $region1: #{tpu_custom_call.1} parent=0
    #allocation2 [shape = 'u8[8192]{0}', space=vmem, size = 0x2000, scoped, tag = 'input window, operand 0, single buffered']
    #allocation3 [shape = 's32[1]{0}', space=sflag, size = 0x4, scoped, tag = 'scoped memory for tpu_custom_call.1']
    #allocation4 [shape = 's32[1]{0}', space=sflag, size = 0x4, scoped, tag = 'scoped memory for tpu_custom_call.1']
    #allocation5 [shape = 'u8[8192]{0}', space=vmem, size = 0x2000, scoped, tag = 'output window, operand 0, single buffered']
    %6 = vsyncpa [#allocation3], 0
    %7 = vsyncpa [#allocation4], 0
    // Predicated region
    $region2: #{tpu_custom_call.1} parent=1 // pred_check
      _
    $region3: #{tpu_custom_call.1} parent=1 // pred_check_branch
      %9 = sbr.rel (0) target = $region5
    $region4: #{tpu_custom_call.1} parent=1 // pred_region
      %s11 = ssub.s32 256, 256
      %12 = vsyncadd [#allocation3], %s11
      %s13 = sshll.u32 [#allocation2], 4
      %s14 = int_to_ptr.vmem [resolvable:$true] %s13
      %19 = dma.hbm_to_vmem [thread:$0]  %s0, 256, %s14, [#allocation3], 128, 128, 8
    $region5: #{tpu_custom_call.1} parent=1 // pred_fallthru
      _
    // Predicated region
    $region6: #{tpu_custom_call.1} parent=1 // pred_check
      _
    $region7: #{tpu_custom_call.1} parent=1 // pred_check_branch
      %21 = sbr.rel (0) target = $region9
    $region8: #{tpu_custom_call.1} parent=1 // pred_region
      %22 = dma.done [#allocation3], 256
    $region9: #{tpu_custom_call.1} parent=1 // pred_fallthru
      _
    %v23 = vlaneseq
    %v24 = vand.u32 %v23, 127
    %v25 = vand.u32 %v24, 15
    %vm26 = vcmp.lt.s32.totalorder %v25, 15
    %vm27 = vcmp.lt.s32.totalorder %v25, 14
    %vm28 = vcmp.lt.s32.totalorder %v25, 13
    %vm29 = vcmp.lt.s32.totalorder %v25, 12
    %vm30 = vcmp.lt.s32.totalorder %v25, 11
    %vm31 = vcmp.lt.s32.totalorder %v25, 10
    %vm32 = vcmp.lt.s32.totalorder %v25, 9
    %vm33 = vcmp.lt.s32.totalorder %v25, 8
    %vm34 = vcmp.lt.s32.totalorder %v25, 7
    %vm35 = vcmp.lt.s32.totalorder %v25, 6
    %vm36 = vcmp.lt.s32.totalorder %v25, 5
    %vm37 = vcmp.lt.s32.totalorder %v25, 4
    %vm38 = vcmp.lt.s32.totalorder %v25, 3
    %vm39 = vcmp.lt.s32.totalorder %v25, 2
    %vm40 = vcmp.lt.s32.totalorder %v25, 1
    %v41 = vld [vmem:[#allocation2] sm:$0xff]
    %v42 = vld [vmem:[#allocation2 + $0x8] sm:$0xff]
    %43 = vrot.lane.b32.xlu0 %v41, 127
    %v44 = vpop.permute.xlu0 %43
    %45 = vrot.lane.b32.xlu0 %v42, 127
    %v46 = vpop.permute.xlu0 %45
    %47 = vrot.lane.b32.xlu0 %v41, 15
    %v48 = vpop.permute.xlu0 %47
    %49 = vrot.lane.b32.xlu0 %v42, 15
    %v50 = vpop.permute.xlu0 %49
    %v51 = vsel %vm26, 1, 0
    %vm52 = vcmp.eq.s32.totalorder %v51, 1
    %v53 = vsel %vm52, %v44, %v48
    %v54 = vsel %vm52, %v46, %v50
    %v55 = vmax.f32 %v41, %v53
    %v56 = vmax.f32 %v42, %v54
    %57 = vrot.lane.b32.xlu0 %v55, 126
    %v58 = vpop.permute.xlu0 %57
    %59 = vrot.lane.b32.xlu0 %v56, 126
    %v60 = vpop.permute.xlu0 %59
    %61 = vrot.lane.b32.xlu0 %v55, 14
    %v62 = vpop.permute.xlu0 %61
    %63 = vrot.lane.b32.xlu0 %v56, 14
    %v64 = vpop.permute.xlu0 %63
    %v65 = vsel %vm27, 1, 0
    %vm66 = vcmp.eq.s32.totalorder %v65, 1
    %v67 = vsel %vm66, %v58, %v62
    %v68 = vsel %vm66, %v60, %v64
    %v69 = vmax.f32 %v55, %v67
    %v70 = vmax.f32 %v56, %v68
    %71 = vrot.lane.b32.xlu0 %v69, 124
    %v72 = vpop.permute.xlu0 %71
    %73 = vrot.lane.b32.xlu0 %v70, 124
    %v74 = vpop.permute.xlu0 %73
    %75 = vrot.lane.b32.xlu0 %v69, 12
    %v76 = vpop.permute.xlu0 %75
    %77 = vrot.lane.b32.xlu0 %v70, 12
    %v78 = vpop.permute.xlu0 %77
    %v79 = vsel %vm29, 1, 0
    %vm80 = vcmp.eq.s32.totalorder %v79, 1
    %v81 = vsel %vm80, %v72, %v76
    %v82 = vsel %vm80, %v74, %v78
    %v83 = vmax.f32 %v69, %v81
    %v84 = vmax.f32 %v70, %v82
    %85 = vrot.lane.b32.xlu0 %v83, 120
    %v86 = vpop.permute.xlu0 %85
    %87 = vrot.lane.b32.xlu0 %v84, 120
    %v88 = vpop.permute.xlu0 %87
    %89 = vrot.lane.b32.xlu0 %v83, 8
    %v90 = vpop.permute.xlu0 %89
    %91 = vrot.lane.b32.xlu0 %v84, 8
    %v92 = vpop.permute.xlu0 %91
    %v93 = vsel %vm33, 1, 0
    %vm94 = vcmp.eq.s32.totalorder %v93, 1
    %v95 = vsel %vm94, %v86, %v90
    %v96 = vsel %vm94, %v88, %v92
    %v97 = vmax.f32 %v83, %v95
    %v98 = vmax.f32 %v84, %v96
    %v99 = vsub.f32 %v41, %v97
    %v100 = vsub.f32 %v42, %v98
    %101 = vrot.lane.b32.xlu0 %v99, 127
    %v102 = vpop.permute.xlu0 %101
    %103 = vrot.lane.b32.xlu0 %v100, 127
    %v104 = vpop.permute.xlu0 %103
    %105 = vrot.lane.b32.xlu0 %v99, 15
    %v106 = vpop.permute.xlu0 %105
    %107 = vrot.lane.b32.xlu0 %v100, 15
    %v108 = vpop.permute.xlu0 %107
    %v109 = vsel %vm52, %v102, %v106
    %v110 = vsel %vm52, %v104, %v108
    %vm111 = vcmp.ge.f32.partialorder %v109, %v99
    %vm112 = vcmp.ge.f32.partialorder %v110, %v100
    %v113 = vsel %vm111, 1.0, 0.0
    %v114 = vsel %vm112, 1.0, 0.0
    %v115 = vadd.f32 %v113, 1.0
    %v116 = vadd.f32 %v114, 1.0
    %v117 = vsel %vm111, %v109, 0.0
    %v118 = vsel %vm112, %v110, 0.0
    %v119 = vadd.f32 %v99, %v117
    %v120 = vadd.f32 %v100, %v118
    %121 = vrot.lane.b32.xlu0 %v99, 126
    %v122 = vpop.permute.xlu0 %121
    %123 = vrot.lane.b32.xlu0 %v100, 126
    %v124 = vpop.permute.xlu0 %123
    %125 = vrot.lane.b32.xlu0 %v99, 14
    %v126 = vpop.permute.xlu0 %125
    %127 = vrot.lane.b32.xlu0 %v100, 14
    %v128 = vpop.permute.xlu0 %127
    %v129 = vsel %vm66, %v122, %v126
    %v130 = vsel %vm66, %v124, %v128
    %vm131 = vcmp.ge.f32.partialorder %v129, %v99
    %vm132 = vcmp.ge.f32.partialorder %v130, %v100
    %v133 = vsel %vm131, 1.0, 0.0
    %v134 = vsel %vm132, 1.0, 0.0
    %v135 = vadd.f32 %v115, %v133
    %v136 = vadd.f32 %v116, %v134
    %v137 = vsel %vm131, %v129, 0.0
    %v138 = vsel %vm132, %v130, 0.0
    %v139 = vadd.f32 %v119, %v137
    %v140 = vadd.f32 %v120, %v138
    %141 = vrot.lane.b32.xlu0 %v99, 125
    %v142 = vpop.permute.xlu0 %141
    %143 = vrot.lane.b32.xlu0 %v100, 125
    %v144 = vpop.permute.xlu0 %143
    %145 = vrot.lane.b32.xlu0 %v99, 13
    %v146 = vpop.permute.xlu0 %145
    %147 = vrot.lane.b32.xlu0 %v100, 13
    %v148 = vpop.permute.xlu0 %147
    %v149 = vsel %vm28, 1, 0
    %vm150 = vcmp.eq.s32.totalorder %v149, 1
    %v151 = vsel %vm150, %v142, %v146
    %v152 = vsel %vm150, %v144, %v148
    %vm153 = vcmp.ge.f32.partialorder %v151, %v99
    %vm154 = vcmp.ge.f32.partialorder %v152, %v100
    %v155 = vsel %vm153, 1.0, 0.0
    %v156 = vsel %vm154, 1.0, 0.0
    %v157 = vadd.f32 %v135, %v155
    %v158 = vadd.f32 %v136, %v156
    %v159 = vsel %vm153, %v151, 0.0
    %v160 = vsel %vm154, %v152, 0.0
    %v161 = vadd.f32 %v139, %v159
    %v162 = vadd.f32 %v140, %v160
    %163 = vrot.lane.b32.xlu0 %v99, 124
    %v164 = vpop.permute.xlu0 %163
    %165 = vrot.lane.b32.xlu0 %v100, 124
    %v166 = vpop.permute.xlu0 %165
    %167 = vrot.lane.b32.xlu0 %v99, 12
    %v168 = vpop.permute.xlu0 %167
    %169 = vrot.lane.b32.xlu0 %v100, 12
    %v170 = vpop.permute.xlu0 %169
    %v171 = vsel %vm80, %v164, %v168
    %v172 = vsel %vm80, %v166, %v170
    %vm173 = vcmp.ge.f32.partialorder %v171, %v99
    %vm174 = vcmp.ge.f32.partialorder %v172, %v100
    %v175 = vsel %vm173, 1.0, 0.0
    %v176 = vsel %vm174, 1.0, 0.0
    %v177 = vadd.f32 %v157, %v175
    %v178 = vadd.f32 %v158, %v176
    %v179 = vsel %vm173, %v171, 0.0
    %v180 = vsel %vm174, %v172, 0.0
    %v181 = vadd.f32 %v161, %v179
    %v182 = vadd.f32 %v162, %v180
    %183 = vrot.lane.b32.xlu0 %v99, 123
    %v184 = vpop.permute.xlu0 %183
    %185 = vrot.lane.b32.xlu0 %v100, 123
    %v186 = vpop.permute.xlu0 %185
    %187 = vrot.lane.b32.xlu0 %v99, 11
    %v188 = vpop.permute.xlu0 %187
    %189 = vrot.lane.b32.xlu0 %v100, 11
    %v190 = vpop.permute.xlu0 %189
    %v191 = vsel %vm30, 1, 0
    %vm192 = vcmp.eq.s32.totalorder %v191, 1
    %v193 = vsel %vm192, %v184, %v188
    %v194 = vsel %vm192, %v186, %v190
    %vm195 = vcmp.ge.f32.partialorder %v193, %v99
    %vm196 = vcmp.ge.f32.partialorder %v194, %v100
    %v197 = vsel %vm195, 1.0, 0.0
    %v198 = vsel %vm196, 1.0, 0.0
    %v199 = vadd.f32 %v177, %v197
    %v200 = vadd.f32 %v178, %v198
    %v201 = vsel %vm195, %v193, 0.0
    %v202 = vsel %vm196, %v194, 0.0
    %v203 = vadd.f32 %v181, %v201
    %v204 = vadd.f32 %v182, %v202
    %205 = vrot.lane.b32.xlu0 %v99, 122
    %v206 = vpop.permute.xlu0 %205
    %207 = vrot.lane.b32.xlu0 %v100, 122
    %v208 = vpop.permute.xlu0 %207
    %209 = vrot.lane.b32.xlu0 %v99, 10
    %v210 = vpop.permute.xlu0 %209
    %211 = vrot.lane.b32.xlu0 %v100, 10
    %v212 = vpop.permute.xlu0 %211
    %v213 = vsel %vm31, 1, 0
    %vm214 = vcmp.eq.s32.totalorder %v213, 1
    %v215 = vsel %vm214, %v206, %v210
    %v216 = vsel %vm214, %v208, %v212
    %vm217 = vcmp.ge.f32.partialorder %v215, %v99
    %vm218 = vcmp.ge.f32.partialorder %v216, %v100
    %v219 = vsel %vm217, 1.0, 0.0
    %v220 = vsel %vm218, 1.0, 0.0
    %v221 = vadd.f32 %v199, %v219
    %v222 = vadd.f32 %v200, %v220
    %v223 = vsel %vm217, %v215, 0.0
    %v224 = vsel %vm218, %v216, 0.0
    %v225 = vadd.f32 %v203, %v223
    %v226 = vadd.f32 %v204, %v224
    %227 = vrot.lane.b32.xlu0 %v99, 121
    %v228 = vpop.permute.xlu0 %227
    %229 = vrot.lane.b32.xlu0 %v100, 121
    %v230 = vpop.permute.xlu0 %229
    %231 = vrot.lane.b32.xlu0 %v99, 9
    %v232 = vpop.permute.xlu0 %231
    %233 = vrot.lane.b32.xlu0 %v100, 9
    %v234 = vpop.permute.xlu0 %233
    %v235 = vsel %vm32, 1, 0
    %vm236 = vcmp.eq.s32.totalorder %v235, 1
    %v237 = vsel %vm236, %v228, %v232
    %v238 = vsel %vm236, %v230, %v234
    %vm239 = vcmp.ge.f32.partialorder %v237, %v99
    %vm240 = vcmp.ge.f32.partialorder %v238, %v100
    %v241 = vsel %vm239, 1.0, 0.0
    %v242 = vsel %vm240, 1.0, 0.0
    %v243 = vadd.f32 %v221, %v241
    %v244 = vadd.f32 %v222, %v242
    %v245 = vsel %vm239, %v237, 0.0
    %v246 = vsel %vm240, %v238, 0.0
    %v247 = vadd.f32 %v225, %v245
    %v248 = vadd.f32 %v226, %v246
    %249 = vrot.lane.b32.xlu0 %v99, 120
    %v250 = vpop.permute.xlu0 %249
    %251 = vrot.lane.b32.xlu0 %v100, 120
    %v252 = vpop.permute.xlu0 %251
    %253 = vrot.lane.b32.xlu0 %v99, 8
    %v254 = vpop.permute.xlu0 %253
    %255 = vrot.lane.b32.xlu0 %v100, 8
    %v256 = vpop.permute.xlu0 %255
    %v257 = vsel %vm94, %v250, %v254
    %v258 = vsel %vm94, %v252, %v256
    %vm259 = vcmp.ge.f32.partialorder %v257, %v99
    %vm260 = vcmp.ge.f32.partialorder %v258, %v100
    %v261 = vsel %vm259, 1.0, 0.0
    %v262 = vsel %vm260, 1.0, 0.0
    %v263 = vadd.f32 %v243, %v261
    %v264 = vadd.f32 %v244, %v262
    %v265 = vsel %vm259, %v257, 0.0
    %v266 = vsel %vm260, %v258, 0.0
    %v267 = vadd.f32 %v247, %v265
    %v268 = vadd.f32 %v248, %v266
    %269 = vrot.lane.b32.xlu0 %v99, 119
    %v270 = vpop.permute.xlu0 %269
    %271 = vrot.lane.b32.xlu0 %v100, 119
    %v272 = vpop.permute.xlu0 %271
    %273 = vrot.lane.b32.xlu0 %v99, 7
    %v274 = vpop.permute.xlu0 %273
    %275 = vrot.lane.b32.xlu0 %v100, 7
    %v276 = vpop.permute.xlu0 %275
    %v277 = vsel %vm34, 1, 0
    %vm278 = vcmp.eq.s32.totalorder %v277, 1
    %v279 = vsel %vm278, %v270, %v274
    %v280 = vsel %vm278, %v272, %v276
    %vm281 = vcmp.ge.f32.partialorder %v279, %v99
    %vm282 = vcmp.ge.f32.partialorder %v280, %v100
    %v283 = vsel %vm281, 1.0, 0.0
    %v284 = vsel %vm282, 1.0, 0.0
    %v285 = vadd.f32 %v263, %v283
    %v286 = vadd.f32 %v264, %v284
    %v287 = vsel %vm281, %v279, 0.0
    %v288 = vsel %vm282, %v280, 0.0
    %v289 = vadd.f32 %v267, %v287
    %v290 = vadd.f32 %v268, %v288
    %291 = vrot.lane.b32.xlu0 %v99, 118
    %v292 = vpop.permute.xlu0 %291
    %293 = vrot.lane.b32.xlu0 %v100, 118
    %v294 = vpop.permute.xlu0 %293
    %295 = vrot.lane.b32.xlu0 %v99, 6
    %v296 = vpop.permute.xlu0 %295
    %297 = vrot.lane.b32.xlu0 %v100, 6
    %v298 = vpop.permute.xlu0 %297
    %v299 = vsel %vm35, 1, 0
    %vm300 = vcmp.eq.s32.totalorder %v299, 1
    %v301 = vsel %vm300, %v292, %v296
    %v302 = vsel %vm300, %v294, %v298
    %vm303 = vcmp.ge.f32.partialorder %v301, %v99
    %vm304 = vcmp.ge.f32.partialorder %v302, %v100
    %v305 = vsel %vm303, 1.0, 0.0
    %v306 = vsel %vm304, 1.0, 0.0
    %v307 = vadd.f32 %v285, %v305
    %v308 = vadd.f32 %v286, %v306
    %v309 = vsel %vm303, %v301, 0.0
    %v310 = vsel %vm304, %v302, 0.0
    %v311 = vadd.f32 %v289, %v309
    %v312 = vadd.f32 %v290, %v310
    %313 = vrot.lane.b32.xlu0 %v99, 117
    %v314 = vpop.permute.xlu0 %313
    %315 = vrot.lane.b32.xlu0 %v100, 117
    %v316 = vpop.permute.xlu0 %315
    %317 = vrot.lane.b32.xlu0 %v99, 5
    %v318 = vpop.permute.xlu0 %317
    %319 = vrot.lane.b32.xlu0 %v100, 5
    %v320 = vpop.permute.xlu0 %319
    %v321 = vsel %vm36, 1, 0
    %vm322 = vcmp.eq.s32.totalorder %v321, 1
    %v323 = vsel %vm322, %v314, %v318
    %v324 = vsel %vm322, %v316, %v320
    %vm325 = vcmp.ge.f32.partialorder %v323, %v99
    %vm326 = vcmp.ge.f32.partialorder %v324, %v100
    %v327 = vsel %vm325, 1.0, 0.0
    %v328 = vsel %vm326, 1.0, 0.0
    %v329 = vadd.f32 %v307, %v327
    %v330 = vadd.f32 %v308, %v328
    %v331 = vsel %vm325, %v323, 0.0
    %v332 = vsel %vm326, %v324, 0.0
    %v333 = vadd.f32 %v311, %v331
    %v334 = vadd.f32 %v312, %v332
    %335 = vrot.lane.b32.xlu0 %v99, 116
    %v336 = vpop.permute.xlu0 %335
    %337 = vrot.lane.b32.xlu0 %v100, 116
    %v338 = vpop.permute.xlu0 %337
    %339 = vrot.lane.b32.xlu0 %v99, 4
    %v340 = vpop.permute.xlu0 %339
    %341 = vrot.lane.b32.xlu0 %v100, 4
    %v342 = vpop.permute.xlu0 %341
    %v343 = vsel %vm37, 1, 0
    %vm344 = vcmp.eq.s32.totalorder %v343, 1
    %v345 = vsel %vm344, %v336, %v340
    %v346 = vsel %vm344, %v338, %v342
    %vm347 = vcmp.ge.f32.partialorder %v345, %v99
    %vm348 = vcmp.ge.f32.partialorder %v346, %v100
    %v349 = vsel %vm347, 1.0, 0.0
    %v350 = vsel %vm348, 1.0, 0.0
    %v351 = vadd.f32 %v329, %v349
    %v352 = vadd.f32 %v330, %v350
    %v353 = vsel %vm347, %v345, 0.0
    %v354 = vsel %vm348, %v346, 0.0
    %v355 = vadd.f32 %v333, %v353
    %v356 = vadd.f32 %v334, %v354
    %357 = vrot.lane.b32.xlu0 %v99, 115
    %v358 = vpop.permute.xlu0 %357
    %359 = vrot.lane.b32.xlu0 %v100, 115
    %v360 = vpop.permute.xlu0 %359
    %361 = vrot.lane.b32.xlu0 %v99, 3
    %v362 = vpop.permute.xlu0 %361
    %363 = vrot.lane.b32.xlu0 %v100, 3
    %v364 = vpop.permute.xlu0 %363
    %v365 = vsel %vm38, 1, 0
    %vm366 = vcmp.eq.s32.totalorder %v365, 1
    %v367 = vsel %vm366, %v358, %v362
    %v368 = vsel %vm366, %v360, %v364
    %vm369 = vcmp.ge.f32.partialorder %v367, %v99
    %vm370 = vcmp.ge.f32.partialorder %v368, %v100
    %v371 = vsel %vm369, 1.0, 0.0
    %v372 = vsel %vm370, 1.0, 0.0
    %v373 = vadd.f32 %v351, %v371
    %v374 = vadd.f32 %v352, %v372
    %v375 = vsel %vm369, %v367, 0.0
    %v376 = vsel %vm370, %v368, 0.0
    %v377 = vadd.f32 %v355, %v375
    %v378 = vadd.f32 %v356, %v376
    %379 = vrot.lane.b32.xlu0 %v99, 114
    %v380 = vpop.permute.xlu0 %379
    %381 = vrot.lane.b32.xlu0 %v100, 114
    %v382 = vpop.permute.xlu0 %381
    %383 = vrot.lane.b32.xlu0 %v99, 2
    %v384 = vpop.permute.xlu0 %383
    %385 = vrot.lane.b32.xlu0 %v100, 2
    %v386 = vpop.permute.xlu0 %385
    %v387 = vsel %vm39, 1, 0
    %vm388 = vcmp.eq.s32.totalorder %v387, 1
    %v389 = vsel %vm388, %v380, %v384
    %v390 = vsel %vm388, %v382, %v386
    %vm391 = vcmp.ge.f32.partialorder %v389, %v99
    %vm392 = vcmp.ge.f32.partialorder %v390, %v100
    %v393 = vsel %vm391, 1.0, 0.0
    %v394 = vsel %vm392, 1.0, 0.0
    %v395 = vadd.f32 %v373, %v393
    %v396 = vadd.f32 %v374, %v394
    %v397 = vsel %vm391, %v389, 0.0
    %v398 = vsel %vm392, %v390, 0.0
    %v399 = vadd.f32 %v377, %v397
    %v400 = vadd.f32 %v378, %v398
    %401 = vrot.lane.b32.xlu0 %v99, 113
    %v402 = vpop.permute.xlu0 %401
    %403 = vrot.lane.b32.xlu0 %v100, 113
    %v404 = vpop.permute.xlu0 %403
    %405 = vrot.lane.b32.xlu0 %v99, 1
    %v406 = vpop.permute.xlu0 %405
    %407 = vrot.lane.b32.xlu0 %v100, 1
    %v408 = vpop.permute.xlu0 %407
    %v409 = vsel %vm40, 1, 0
    %vm410 = vcmp.eq.s32.totalorder %v409, 1
    %v411 = vsel %vm410, %v402, %v406
    %v412 = vsel %vm410, %v404, %v408
    %vm413 = vcmp.ge.f32.partialorder %v411, %v99
    %vm414 = vcmp.ge.f32.partialorder %v412, %v100
    %v415 = vsel %vm413, 1.0, 0.0
    %v416 = vsel %vm414, 1.0, 0.0
    %v417 = vadd.f32 %v395, %v415
    %v418 = vadd.f32 %v396, %v416
    %v419 = vsel %vm413, %v411, 0.0
    %v420 = vsel %vm414, %v412, 0.0
    %v421 = vadd.f32 %v399, %v419
    %v422 = vadd.f32 %v400, %v420
    %v423 = vmul.f32 %v417, %v99
    %v424 = vmul.f32 %v418, %v100
    %v425 = vadd.f32 %v423, 1.0
    %v426 = vadd.f32 %v424, 1.0
    %vm427 = vcmp.gt.f32.partialorder %v425, %v421
    %vm428 = vcmp.gt.f32.partialorder %v426, %v422
    %v429 = vsel %vm427, %v417, 0.0
    %v430 = vsel %vm428, %v418, 0.0
    %v431 = vsel %vm427, %v421, 0.0
    %v432 = vsel %vm428, %v422, 0.0
    %433 = vrot.lane.b32.xlu0 %v429, 127
    %v434 = vpop.permute.xlu0 %433
    %435 = vrot.lane.b32.xlu0 %v430, 127
    %v436 = vpop.permute.xlu0 %435
    %437 = vrot.lane.b32.xlu0 %v429, 15
    %v438 = vpop.permute.xlu0 %437
    %439 = vrot.lane.b32.xlu0 %v430, 15
    %v440 = vpop.permute.xlu0 %439
    %v441 = vsel %vm52, %v434, %v438
    %v442 = vsel %vm52, %v436, %v440
    %443 = vrot.lane.b32.xlu0 %v431, 127
    %v444 = vpop.permute.xlu0 %443
    %445 = vrot.lane.b32.xlu0 %v432, 127
    %v446 = vpop.permute.xlu0 %445
    %447 = vrot.lane.b32.xlu0 %v431, 15
    %v448 = vpop.permute.xlu0 %447
    %449 = vrot.lane.b32.xlu0 %v432, 15
    %v450 = vpop.permute.xlu0 %449
    %v451 = vsel %vm52, %v444, %v448
    %v452 = vsel %vm52, %v446, %v450
    %vm453 = vcmp.gt.f32.partialorder %v441, %v429
    %vm454 = vcmp.gt.f32.partialorder %v442, %v430
    %v455 = vsel %vm453, %v441, %v429
    %v456 = vsel %vm454, %v442, %v430
    %v457 = vsel %vm453, %v451, %v431
    %v458 = vsel %vm454, %v452, %v432
    %459 = vrot.lane.b32.xlu0 %v455, 126
    %v460 = vpop.permute.xlu0 %459
    %461 = vrot.lane.b32.xlu0 %v456, 126
    %v462 = vpop.permute.xlu0 %461
    %463 = vrot.lane.b32.xlu0 %v455, 14
    %v464 = vpop.permute.xlu0 %463
    %465 = vrot.lane.b32.xlu0 %v456, 14
    %v466 = vpop.permute.xlu0 %465
    %v467 = vsel %vm66, %v460, %v464
    %v468 = vsel %vm66, %v462, %v466
    %469 = vrot.lane.b32.xlu0 %v457, 126
    %v470 = vpop.permute.xlu0 %469
    %471 = vrot.lane.b32.xlu0 %v458, 126
    %v472 = vpop.permute.xlu0 %471
    %473 = vrot.lane.b32.xlu0 %v457, 14
    %v474 = vpop.permute.xlu0 %473
    %475 = vrot.lane.b32.xlu0 %v458, 14
    %v476 = vpop.permute.xlu0 %475
    %v477 = vsel %vm66, %v470, %v474
    %v478 = vsel %vm66, %v472, %v476
    %vm479 = vcmp.gt.f32.partialorder %v467, %v455
    %vm480 = vcmp.gt.f32.partialorder %v468, %v456
    %v481 = vsel %vm479, %v467, %v455
    %v482 = vsel %vm480, %v468, %v456
    %v483 = vsel %vm479, %v477, %v457
    %v484 = vsel %vm480, %v478, %v458
    %485 = vrot.lane.b32.xlu0 %v481, 124
    %v486 = vpop.permute.xlu0 %485
    %487 = vrot.lane.b32.xlu0 %v482, 124
    %v488 = vpop.permute.xlu0 %487
    %489 = vrot.lane.b32.xlu0 %v481, 12
    %v490 = vpop.permute.xlu0 %489
    %491 = vrot.lane.b32.xlu0 %v482, 12
    %v492 = vpop.permute.xlu0 %491
    %v493 = vsel %vm80, %v486, %v490
    %v494 = vsel %vm80, %v488, %v492
    %495 = vrot.lane.b32.xlu0 %v483, 124
    %v496 = vpop.permute.xlu0 %495
    %497 = vrot.lane.b32.xlu0 %v484, 124
    %v498 = vpop.permute.xlu0 %497
    %499 = vrot.lane.b32.xlu0 %v483, 12
    %v500 = vpop.permute.xlu0 %499
    %501 = vrot.lane.b32.xlu0 %v484, 12
    %v502 = vpop.permute.xlu0 %501
    %v503 = vsel %vm80, %v496, %v500
    %v504 = vsel %vm80, %v498, %v502
    %vm505 = vcmp.gt.f32.partialorder %v493, %v481
    %vm506 = vcmp.gt.f32.partialorder %v494, %v482
    %v507 = vsel %vm505, %v493, %v481
    %v508 = vsel %vm506, %v494, %v482
    %v509 = vsel %vm505, %v503, %v483
    %v510 = vsel %vm506, %v504, %v484
    %511 = vrot.lane.b32.xlu0 %v507, 120
    %v512 = vpop.permute.xlu0 %511
    %513 = vrot.lane.b32.xlu0 %v508, 120
    %v514 = vpop.permute.xlu0 %513
    %515 = vrot.lane.b32.xlu0 %v507, 8
    %v516 = vpop.permute.xlu0 %515
    %517 = vrot.lane.b32.xlu0 %v508, 8
    %v518 = vpop.permute.xlu0 %517
    %v519 = vsel %vm94, %v512, %v516
    %v520 = vsel %vm94, %v514, %v518
    %521 = vrot.lane.b32.xlu0 %v509, 120
    %v522 = vpop.permute.xlu0 %521
    %523 = vrot.lane.b32.xlu0 %v510, 120
    %v524 = vpop.permute.xlu0 %523
    %525 = vrot.lane.b32.xlu0 %v509, 8
    %v526 = vpop.permute.xlu0 %525
    %527 = vrot.lane.b32.xlu0 %v510, 8
    %v528 = vpop.permute.xlu0 %527
    %v529 = vsel %vm94, %v522, %v526
    %v530 = vsel %vm94, %v524, %v528
    %vm531 = vcmp.gt.f32.partialorder %v519, %v507
    %vm532 = vcmp.gt.f32.partialorder %v520, %v508
    %v533 = vsel %vm531, %v519, %v507
    %v534 = vsel %vm532, %v520, %v508
    %v535 = vsel %vm531, %v529, %v509
    %v536 = vsel %vm532, %v530, %v510
    %v537 = vsub.f32 %v535, 1.0
    %v538 = vsub.f32 %v536, 1.0
    %v539 = vrcp.pop %v533
    %v540 = vmul.f32 %v537, %v539
    %v541 = vrcp.pop %v534
    %v542 = vmul.f32 %v538, %v541
    %v543 = vsub.f32 %v99, %v540
    %v544 = vsub.f32 %v100, %v542
    %v545 = vmax.f32 %v543, 0.0
    %v546 = vmax.f32 %v544, 0.0
    %547 = vst [vmem:[#allocation5] sm:$0xff] %v545
    %548 = vst [vmem:[#allocation5 + $0x8] sm:$0xff] %v546
    // Predicated region
    $region10: #{tpu_custom_call.1} parent=1 // pred_check
      _
    $region11: #{tpu_custom_call.1} parent=1 // pred_check_branch
      %550 = sbr.rel (0) target = $region13
    $region12: #{tpu_custom_call.1} parent=1 // pred_region
      %s552 = ssub.s32 256, 256
      %553 = vsyncadd [#allocation4], %s552
      %s554 = sshll.u32 [#allocation5], 4
      %s555 = int_to_ptr.vmem [resolvable:$true] %s554
      %560 = dma.vmem_to_hbm [thread:$0]  %s555, 256, %s1, [#allocation4], 128, 128, 8
    $region13: #{tpu_custom_call.1} parent=1 // pred_fallthru
      _
    // Predicated region
    $region14: #{tpu_custom_call.1} parent=1 // pred_check
      _
    $region15: #{tpu_custom_call.1} parent=1 // pred_check_branch
      %562 = sbr.rel (0) target = $region17
    $region16: #{tpu_custom_call.1} parent=1 // pred_region
      %563 = dma.done [#allocation4], 256
    $region17: #{tpu_custom_call.1} parent=1 // pred_fallthru
      _
    %564 = vsyncpa [#allocation3], 1
    %565 = vsyncpa [#allocation4], 1

</llo_original>
